<compile_context>
chip_gen: v7x
topology: tpu7x:2x2x1
jax: 0.10.0
libtpu: 0.0.40
codegen_flags: <defaults>
</compile_context>

<pallas_src>
import jax
import jax.numpy as jnp
from jax.experimental import pallas as pl
from jax.experimental.pallas import tpu as pltpu

_LANE = 128
_SUBLANE = 8
# Per-input-tile byte target.  Conservative enough that in+out double buffers
# (4x tile) plus the P slice fit v7x's 64 MiB VMEM with large headroom; tile
# sweeps show only ~1-2% left on the table beyond ~4 MiB tiles.
_TILE_BYTES = 4 << 20


def _program_kernel(x_ref, p_ref, o_ref):
    # x_ref: (bn, bf) tile of flattened images; p_ref: (1, bf) slice of P.
    # tanh on the EUP is hidden under the HBM-bound load/add/clip/store loop.
    o_ref[...] = jnp.clip(x_ref[...] + jnp.tanh(p_ref[...]), -1.0, 1.0)


def _choose_tiles(N, F, itemsize):
    """Pick (bn, bf) row/feature tile sizes that respect the VMEM budget."""
    row_bytes = F * itemsize

    # Tile the feature axis only when even a minimal (<=8-row) slab of the
    # full F would blow the tile budget (large-image case).  bf is a multiple
    # of 128 lanes; a ragged last F block is handled by Pallas masking.
    if row_bytes * min(N, _SUBLANE) > _TILE_BYTES:
        bf = (_TILE_BYTES // (_SUBLANE * itemsize)) // _LANE * _LANE
        bf = min(F, max(_LANE, bf))
    else:
        bf = F

    # Row tile: as many rows as fit the budget.
    bn = max(1, _TILE_BYTES // (bf * itemsize))
    bn = min(bn, N)
    if bn < N:
        # Keep the sublane (second-to-last) block dim a multiple of 8.  By
        # construction 8 * bf * itemsize <= _TILE_BYTES here, so this round-up
        # can never exceed the budget.
        bn = min(N, max(_SUBLANE, (bn // _SUBLANE) * _SUBLANE))

    # Give multi-TensorCore parts (v7x) at least 2 row blocks to shard when
    # the batch is large enough to split without breaking sublane alignment.
    if bn == N and N >= 2 * _SUBLANE:
        half = pl.cdiv(N, 2)
        bn = min(N, ((half + _SUBLANE - 1) // _SUBLANE) * _SUBLANE)

    return bn, bf


@jax.jit
def program_forward(x, P):
    """Pallas equivalent of Program.forward.

    x : (N, C, H, W) float32  (or already-flattened (N, F))
    P : (C, H, W)    float32  learnable perturbation (zeros at init)
    """
    orig_shape = x.shape
    if x.ndim == 2:
        N, F = x.shape
    else:
        N = x.shape[0]
        F = 1
        for d in x.shape[1:]:
            F *= d
    assert P.size == F, "P must match the per-image feature count"
    itemsize = jnp.dtype(x.dtype).itemsize

    # Lane-dense layout.  If the caller already keeps (N, F) this is a no-op.
    x_flat = x.reshape(N, F)
    p_flat = P.astype(x.dtype).reshape(1, F)

    bn, bf = _choose_tiles(N, F, itemsize)
    grid_n = pl.cdiv(N, bn)
    grid_f = pl.cdiv(F, bf)

    # VMEM budget: in + out double-buffered tiles, double-buffered P slice,
    # plus slack; capped well under v7x's 64 MiB physical VMEM.
    tile_bytes = bn * bf * itemsize
    vmem_bytes = 4 * tile_bytes + 2 * bf * itemsize + (1 << 20)
    vmem_bytes = int(min(max(vmem_bytes, 4 << 20), 48 << 20))

    out_flat = pl.pallas_call(
        _program_kernel,
        out_shape=jax.ShapeDtypeStruct((N, F), x.dtype),
        grid_spec=pltpu.PrefetchScalarGridSpec(
            num_scalar_prefetch=0,
            # Feature axis outermost so the P slice stays resident across the
            # inner row loop (it only changes when f changes).
            grid=(grid_f, grid_n),
            in_specs=[
                pl.BlockSpec((bn, bf), lambda f, n: (n, f)),   # x tile
                pl.BlockSpec((1, bf), lambda f, n: (0, f)),    # P slice
            ],
            out_specs=pl.BlockSpec((bn, bf), lambda f, n: (n, f)),
        ),
        compiler_params=pltpu.CompilerParams(
            dimension_semantics=("parallel", "parallel"),
            vmem_limit_bytes=vmem_bytes,
        ),
    )(x_flat, p_flat)

    return out_flat.reshape(orig_shape)


if __name__ == "__main__":
    # Shapes consistent with the module: cfg.channels=4, cfg.h1=16, cfg.w1=16.
    N, C, H, W = 2, 4, 16, 16

    key = jax.random.PRNGKey(0)
    kx, kp = jax.random.split(key)

    # Input in roughly [-1.5, 1.5] so the clamp is exercised.
    x = 1.5 * jax.random.normal(kx, (N, C, H, W), dtype=jnp.float32)

    # Parameter init matches Program.init_perturbation: zeros.
    P = jnp.zeros((C, H, W), dtype=jnp.float32)

    out = jax.block_until_ready(program_forward(x, P))
    ref = jnp.clip(x + jnp.tanh(P)[None, ...], -1.0, 1.0)
    assert out.shape == (N, C, H, W) and out.dtype == x.dtype
    assert jnp.allclose(out, ref, atol=1e-6), "mismatch vs reference (zero P)"

    # Non-zero deterministic P to exercise the in-kernel tanh path.
    P2 = 0.5 * jax.random.normal(kp, (C, H, W), dtype=jnp.float32)
    out2 = jax.block_until_ready(program_forward(x, P2))
    ref2 = jnp.clip(x + jnp.tanh(P2)[None, ...], -1.0, 1.0)
    assert jnp.allclose(out2, ref2, atol=1e-6), "mismatch vs reference (nonzero P)"

    print("KERNEL_OK")
</pallas_src>

<mosaic_0001>
module attributes {stable_mosaic.version = 11 : i64} {
  func.func @_program_kernel(%arg0: i32, %arg1: i32, %arg2: memref<2x1024xf32, #tpu.memory_space<vmem>>, %arg3: memref<1x1024xf32, #tpu.memory_space<vmem>>, %arg4: memref<2x1024xf32, #tpu.memory_space<vmem>>) attributes {dimension_semantics = [#tpu.dimension_semantics<parallel>, #tpu.dimension_semantics<parallel>], iteration_bounds = array<i64: 1, 1>, scalar_prefetch = 0 : i64, scratch_operands = 0 : i64, tpu.core_type = #tpu.core_type<tc>, window_params = [{transform_indices = @transform_0, window_bounds = array<i64: 2, 1024>}, {transform_indices = @transform_1, window_bounds = array<i64: 1, 1024>}, {transform_indices = @transform_2, window_bounds = array<i64: 2, 1024>}]} {
    %c0 = arith.constant 0 : index
    %c0_0 = arith.constant 0 : index
    %0 = vector.load %arg2[%c0, %c0_0] : memref<2x1024xf32, #tpu.memory_space<vmem>>, vector<2x1024xf32>
    %c0_1 = arith.constant 0 : index
    %c0_2 = arith.constant 0 : index
    %1 = vector.load %arg3[%c0_1, %c0_2] : memref<1x1024xf32, #tpu.memory_space<vmem>>, vector<1x1024xf32>
    %2 = math.tanh %1 : vector<1x1024xf32>
    %3 = vector.broadcast %2 : vector<1x1024xf32> to vector<2x1024xf32>
    %4 = arith.addf %0, %3 : vector<2x1024xf32>
    %cst = arith.constant -1.000000e+00 : f32
    %cst_3 = arith.constant 1.000000e+00 : f32
    %5 = vector.broadcast %cst : f32 to vector<2x1024xf32>
    %6 = arith.maximumf %5, %4 : vector<2x1024xf32>
    %7 = vector.broadcast %cst_3 : f32 to vector<2x1024xf32>
    %8 = arith.minimumf %7, %6 : vector<2x1024xf32>
    %c0_4 = arith.constant 0 : index
    %c0_5 = arith.constant 0 : index
    %9 = vector.load %arg4[%c0_4, %c0_5] : memref<2x1024xf32, #tpu.memory_space<vmem>>, vector<2x1024xf32>
    tpu.vector_store %arg4[%c0_4, %c0_5], %8 {strides = array<i32>} : memref<2x1024xf32, #tpu.memory_space<vmem>>, vector<2x1024xf32>,
    return
  }
  func.func @transform_0(%arg0: i32, %arg1: i32) -> (i32, i32) {
    %c0_i32 = arith.constant 0 : i32
    return %arg1, %arg0 : i32, i32
  }
  func.func @transform_1(%arg0: i32, %arg1: i32) -> (i32, i32) {
    %c0_i32 = arith.constant 0 : i32
    %c0_i32_0 = arith.constant 0 : i32
    return %c0_i32, %arg0 : i32, i32
  }
  func.func @transform_2(%arg0: i32, %arg1: i32) -> (i32, i32) {
    %c0_i32 = arith.constant 0 : i32
    return %arg1, %arg0 : i32, i32
  }
}

</mosaic_0001>

<llo_original>
// kernel: program_forward.1
$region0: #{program_forward.1}
  #allocation0 [shape = 'u32[]', space=smem, size = 0x4, offset = 0x4, fixed_abs, tag = 'smem constant byte address 0x4 - core index']
  #allocation1 [shape = 'u32[144,128]{1,0:T(1,128)}', space=vmem, size = 0x12000, scoped, tag = 'internal scratch']
  %s0 = inlined_call_operand.vmem [shape: f32[2,1024], index: 0, kind: input, shape index: {}]
  %s1 = inlined_call_operand.vmem [shape: f32[1,1024], index: 1, kind: input, shape index: {}]
  %s2 = inlined_call_operand.vmem [shape: f32[2,1024], index: 2, kind: output, shape index: {}]
  %s3 = sld [smem:[#allocation0]]
  $region18: #{program_forward.1} parent=0
    _
  %s5 = ssub.s32 1, %s3
  %s6 = scalar_select 0, %s5, %s3
  // Predicated region
  $region2: #{program_forward.1} parent=0 // pred_check
    _
  $region3: #{program_forward.1} parent=0 // pred_check_branch
    %8 = sbr.rel (0) target = $region5
  $region4: #{program_forward.1} parent=0 // pred_region
    _
  $region5: #{program_forward.1} parent=0 // pred_fallthru
    _
  // Predicated region
  $region6: #{program_forward.1} parent=0 // pred_check
    _
  $region7: #{program_forward.1} parent=0 // pred_check_branch
    %10 = sbr.rel (0) target = $region9
  $region8: #{program_forward.1} parent=0 // pred_region
    _
  $region9: #{program_forward.1} parent=0 // pred_fallthru
    _
  %v11 = vld [vmem:[%s0] sm:$0xff]
  %v12 = vld [vmem:[%s0 + $0x8] sm:$0xff]
  %v13 = vld [vmem:[%s1] sm:$0xff]
  %v14 = vtanh.pop %v13
  %v16 = vlaneseq
  %v17 = vshrl.u32 %v16, 7
  %v18 = vsub.s32 0, %v17
  %v19 = vrot.slane %v14, %v18
  %v20 = vlaneseq
  %v21 = vshrl.u32 %v20, 7
  %v22 = vsub.s32 1, %v21
  %v23 = vrot.slane %v14, %v22
  %v24 = vlaneseq
  %v25 = vshrl.u32 %v24, 7
  %v26 = vsub.s32 2, %v25
  %v27 = vrot.slane %v14, %v26
  %v28 = vlaneseq
  %v29 = vshrl.u32 %v28, 7
  %v30 = vsub.s32 3, %v29
  %v31 = vrot.slane %v14, %v30
  %v32 = vlaneseq
  %v33 = vshrl.u32 %v32, 7
  %v34 = vsub.s32 4, %v33
  %v35 = vrot.slane %v14, %v34
  %v36 = vlaneseq
  %v37 = vshrl.u32 %v36, 7
  %v38 = vsub.s32 5, %v37
  %v39 = vrot.slane %v14, %v38
  %v40 = vlaneseq
  %v41 = vshrl.u32 %v40, 7
  %v42 = vsub.s32 6, %v41
  %v43 = vrot.slane %v14, %v42
  %v44 = vlaneseq
  %v45 = vshrl.u32 %v44, 7
  %v46 = vsub.s32 7, %v45
  %v47 = vrot.slane %v14, %v46
  %v48 = vcombine.low %v19, %v23
  %v49 = vcombine.low %v27, %v31
  %v51 = vunpack.c.l.s4 1983009808
  %v52 = vunpack.c.0.s8 %v51
  %v53 = vlaneseq
  %v54 = vshrl.u32 %v53, 7
  %v55 = vsub.s32 %v52, %v54
  %v56 = vrot.slane %v48, %v55
  %v58 = vunpack.c.l.s4 1983009808
  %v59 = vunpack.c.0.s8 %v58
  %v60 = vlaneseq
  %v61 = vshrl.u32 %v60, 7
  %v62 = vsub.s32 %v59, %v61
  %v63 = vrot.slane %v49, %v62
  %v64 = vcombine.low %v56, %v63
  %v65 = vcombine.low %v35, %v39
  %v66 = vcombine.low %v43, %v47
  %v68 = vunpack.c.l.s4 1983009808
  %v69 = vunpack.c.0.s8 %v68
  %v70 = vlaneseq
  %v71 = vshrl.u32 %v70, 7
  %v72 = vsub.s32 %v69, %v71
  %v73 = vrot.slane %v65, %v72
  %v75 = vunpack.c.l.s4 1983009808
  %v76 = vunpack.c.0.s8 %v75
  %v77 = vlaneseq
  %v78 = vshrl.u32 %v77, 7
  %v79 = vsub.s32 %v76, %v78
  %v80 = vrot.slane %v66, %v79
  %v81 = vcombine.low %v73, %v80
  %v84 = vadd.f32 %v11, %v64
  %v85 = vadd.f32 %v12, %v81
  %v86 = vmax.f32 %v84, -1.0
  %v87 = vmax.f32 %v85, -1.0
  %v88 = vmin.f32 %v86, 1.0
  %v89 = vmin.f32 %v87, 1.0
  %90 = vst [vmem:[%s2] sm:$0xff] %v88
  %91 = vst [vmem:[%s2 + $0x8] sm:$0xff] %v89
  // Predicated region
  $region10: #{program_forward.1} parent=0 // pred_check
    _
  $region11: #{program_forward.1} parent=0 // pred_check_branch
    %93 = sbr.rel (0) target = $region13
  $region12: #{program_forward.1} parent=0 // pred_region
    _
  $region13: #{program_forward.1} parent=0 // pred_fallthru
    _
  // Predicated region
  $region14: #{program_forward.1} parent=0 // pred_check
    _
  $region15: #{program_forward.1} parent=0 // pred_check_branch
    %95 = sbr.rel (0) target = $region17
  $region16: #{program_forward.1} parent=0 // pred_region
    _
  $region17: #{program_forward.1} parent=0 // pred_fallthru
    _

</llo_original>
